<compile_context>
chip_gen: v5e
topology: v5e:2x2
jax: 0.10.0
libtpu: 0.0.40
codegen_flags: <defaults>
</compile_context>

<pallas_src>
import jax
import jax.numpy as jnp
from jax.experimental import pallas as pl
from jax.experimental.pallas import tpu as pltpu


def _round_up(n, m):
    return ((n + m - 1) // m) * m


def _pad2(a, rows, cols):
    return jnp.pad(a, ((0, rows - a.shape[0]), (0, cols - a.shape[1])))


def liquid_nn_forward(x, h_prev, params, *, matmul_dtype=jnp.bfloat16,
                      recurrent_dtype=jnp.float32, batch_tile=512,
                      alias_state=False):
    """x: (B, I), h_prev: (B, H). Returns (y: (B, O), h: (B, H) in float32)."""
    B, I = x.shape
    H = h_prev.shape[1]
    O = params["w_out"].shape[0]
    f32 = jnp.float32

    # ---- padded sizes ----------------------------------------------------------------
    # Lane-dense (128) padding only where it matters (H/O feed MXU columns and output
    # stores); x's feature dim is padded just to the bf16 sublane quantum (16).
    I_k = _round_up(I, 16)
    H_pad = _round_up(H, 128)
    O_pad = _round_up(O, 128)

    B8 = _round_up(B, 8)
    TB = min(B8, batch_tile)
    if B8 > 8:
        # Guarantee >= 2 grid steps so the "parallel" batch axis can shard across the
        # two TensorCores on v7x (no-op for single-TC v5e/v6e).
        TB = min(TB, _round_up(pl.cdiv(B8, 2), 8))
    B_pad = _round_up(B8, TB)
    grid = (B_pad // TB,)

    # ---- parameter prep (hoisted out of the kernel, done in f32 first) ----------------
    w_ih_t = _pad2(params["w_ih"].astype(f32).T, I_k, H_pad).astype(matmul_dtype)
    w_hh_t = _pad2(params["w_hh"].astype(f32).T, H_pad, H_pad).astype(recurrent_dtype)
    b_cat = _pad2((params["b_ih"] + params["b_hh"]).astype(f32).reshape(1, H), 1, H_pad)
    inv_tau = 1.0 / jnp.abs(params["tau"].astype(f32))
    tau_mix = _pad2(jnp.stack([1.0 - inv_tau, inv_tau], axis=0), 2, H_pad)   # (2, H_pad)
    w_out_t = _pad2(params["w_out"].astype(f32).T, H_pad, O_pad).astype(matmul_dtype)
    b_out = _pad2(params["b_out"].astype(f32).reshape(1, O), 1, O_pad)

    x_p = _pad2(x.astype(matmul_dtype), B_pad, I_k)     # bf16 MXU operand, thin last dim
    h_p = _pad2(h_prev.astype(f32), B_pad, H_pad)       # f32 carried state

    # ---- kernel ------------------------------------------------------------------------
    def kernel(x_ref, h_ref, wih_ref, whh_ref, bias_ref, tau_ref, wout_ref, bout_ref,
               y_ref, hout_ref):
        h_prev_f32 = h_ref[...]                                          # (TB, H_pad) f32
        # RNNCell pre-activation: two MXU dots accumulated in f32 (no concat temp).
        pre = jnp.dot(x_ref[...], wih_ref[...], preferred_element_type=jnp.float32)
        pre = pre + jnp.dot(h_prev_f32.astype(whh_ref.dtype), whh_ref[...],
                            preferred_element_type=jnp.float32)
        pre = pre + bias_ref[...]
        h_rnn = jnp.tanh(pre)                                            # EUP, f32

        # Liquid time-constant mixing: h = (1 - 1/tau) * h_prev + (1/tau) * h_rnn,
        # with both coefficients precomputed in the wrapper (pure FMA here).
        mix = tau_ref[...]                                               # (2, H_pad) f32
        h = mix[0:1, :] * h_prev_f32 + mix[1:2, :] * h_rnn

        # Output projection.
        y = jnp.dot(h.astype(wout_ref.dtype), wout_ref[...],
                    preferred_element_type=jnp.float32) + bout_ref[...]

        y_ref[...] = y.astype(y_ref.dtype)
        hout_ref[...] = h.astype(hout_ref.dtype)

    # ---- cost estimate / VMEM budget -----------------------------------------------------
    mm_item = jnp.dtype(matmul_dtype).itemsize
    rc_item = jnp.dtype(recurrent_dtype).itemsize
    y_item = jnp.dtype(x.dtype).itemsize

    flops = 2 * B_pad * (I_k * H_pad + H_pad * H_pad + H_pad * O_pad) + 6 * B_pad * H_pad
    transcendentals = B_pad * H_pad
    w_bytes = I_k * H_pad * mm_item + H_pad * H_pad * rc_item + H_pad * O_pad * mm_item
    small_bytes = 3 * H_pad * 4 + 2 * O_pad * 4
    bytes_accessed = int(B_pad * (I_k * mm_item + 2 * H_pad * 4 + O_pad * y_item)
                         + w_bytes + small_bytes)
    cost = pl.CostEstimate(flops=flops, transcendentals=transcendentals,
                           bytes_accessed=bytes_accessed)

    # VMEM: weights counted double-buffered (worst case; also covers the fallback path),
    # double-buffered batch tiles, plus headroom.  Cap at 3/4 of the device's VMEM.
    tile_bytes = TB * (I_k * mm_item + 2 * H_pad * 4 + O_pad * y_item)
    vmem_est = 2 * (w_bytes + small_bytes) + 2 * tile_bytes + (4 << 20)
    try:
        vmem_cap = int(pltpu.get_tpu_info().vmem_capacity_bytes) * 3 // 4
    except Exception:
        vmem_cap = 48 << 20          # safe on every generation (v7x has 64 MiB physical)
    vmem_limit = int(min(max(vmem_est, 16 << 20), vmem_cap))

    # ---- specs / call -----------------------------------------------------------------
    out_shape = (
        jax.ShapeDtypeStruct((B_pad, O_pad), x.dtype),
        jax.ShapeDtypeStruct((B_pad, H_pad), jnp.float32),   # carried state stays f32
    )
    out_specs = (
        pl.BlockSpec((TB, O_pad), lambda i: (i, 0)),          # y
        pl.BlockSpec((TB, H_pad), lambda i: (i, 0)),          # h
    )

    def _run(single_buffer_weights):
        def resident(shape):
            if single_buffer_weights:
                return pl.BlockSpec(shape, lambda i: (0, 0),
                                    pipeline_mode=pl.Buffered(1))
            return pl.BlockSpec(shape, lambda i: (0, 0))

        in_specs = [
            pl.BlockSpec((TB, I_k), lambda i: (i, 0)),        # x (bf16, batch-tiled)
            pl.BlockSpec((TB, H_pad), lambda i: (i, 0)),      # h_prev (f32, batch-tiled)
            resident((I_k, H_pad)),                           # W_ih^T     (resident)
            resident((H_pad, H_pad)),                         # W_hh^T     (resident)
            resident((1, H_pad)),                             # b_ih+b_hh  (resident)
            resident((2, H_pad)),                             # [1-1/tau; 1/tau]
            resident((H_pad, O_pad)),                         # W_out^T    (resident)
            resident((1, O_pad)),                             # b_out      (resident)
        ]
        return pl.pallas_call(
            kernel,
            out_shape=out_shape,
            grid=grid,
            in_specs=in_specs,
            out_specs=out_specs,
            compiler_params=pltpu.CompilerParams(
                dimension_semantics=("parallel",),
                vmem_limit_bytes=vmem_limit),
            cost_estimate=cost,
            # h_prev -> h in-place update, useful when driven from a scan over steps.
            input_output_aliases=({1: 1} if alias_state else {}),
        )(x_p, h_p, w_ih_t, w_hh_t, b_cat, tau_mix, w_out_t, b_out)

    try:
        y_p, h_out_p = _run(True)       # single-buffered resident weights
    except Exception:
        # Installed JAX does not accept BlockSpec(pipeline_mode=...): fall back to
        # default double-buffering (VMEM estimate already sized for 2x weights).
        y_p, h_out_p = _run(False)

    return y_p[:B, :O], h_out_p[:B, :H]


def init_params(key, input_size, hidden_size, output_size):
    ks = jax.random.split(key, 7)
    k_rnn = 1.0 / jnp.sqrt(hidden_size)
    k_lin = 1.0 / jnp.sqrt(hidden_size)
    return {
        "w_ih": jax.random.uniform(ks[0], (hidden_size, input_size),
                                   jnp.float32, -k_rnn, k_rnn),
        "w_hh": jax.random.uniform(ks[1], (hidden_size, hidden_size),
                                   jnp.float32, -k_rnn, k_rnn),
        "b_ih": jax.random.uniform(ks[2], (hidden_size,), jnp.float32, -k_rnn, k_rnn),
        "b_hh": jax.random.uniform(ks[3], (hidden_size,), jnp.float32, -k_rnn, k_rnn),
        "tau": jax.random.uniform(ks[4], (hidden_size,), jnp.float32, 0.1, 1.0),
        "w_out": jax.random.uniform(ks[5], (output_size, hidden_size),
                                    jnp.float32, -k_lin, k_lin),
        "b_out": jax.random.uniform(ks[6], (output_size,), jnp.float32, -k_lin, k_lin),
    }


def reference_forward(x, h_prev, p, matmul_dtype=None, recurrent_dtype=None):
    """Pure-JAX reference mirroring the kernel's per-matmul operand dtypes
    (f32 accumulation); elementwise math is f32."""
    md = matmul_dtype if matmul_dtype is not None else jnp.float32
    rd = recurrent_dtype if recurrent_dtype is not None else jnp.float32
    pre = (jnp.dot(x.astype(md), p["w_ih"].T.astype(md),
                   preferred_element_type=jnp.float32)
           + jnp.dot(h_prev.astype(rd), p["w_hh"].T.astype(rd),
                     preferred_element_type=jnp.float32)
           + p["b_ih"] + p["b_hh"])
    h_rnn = jnp.tanh(pre)
    inv_tau = 1.0 / jnp.abs(p["tau"])
    h = (1.0 - inv_tau) * h_prev + inv_tau * h_rnn
    y = (jnp.dot(h.astype(md), p["w_out"].T.astype(md),
                 preferred_element_type=jnp.float32) + p["b_out"])
    return y, h


if __name__ == "__main__":
    B, I, H, O = 8, 16, 32, 8
    key = jax.random.PRNGKey(0)
    kx, kh, kp = jax.random.split(key, 3)

    x = jax.random.normal(kx, (B, I), dtype=jnp.float32)
    h_prev = jax.random.normal(kh, (B, H), dtype=jnp.float32)
    params = init_params(kp, I, H, O)

    y, h = liquid_nn_forward(x, h_prev, params)
    jax.block_until_ready((y, h))

    # Reference at matching precision (bf16 input/output projections, f32 recurrent path).
    y_ref, h_ref = reference_forward(x, h_prev, params,
                                     matmul_dtype=jnp.bfloat16,
                                     recurrent_dtype=jnp.float32)
    assert y.shape == (B, O) and h.shape == (B, H)
    assert jnp.allclose(y, y_ref, atol=2e-3, rtol=2e-3), \
        float(jnp.max(jnp.abs(y - y_ref)))
    assert jnp.allclose(h, h_ref, atol=2e-3, rtol=2e-3), \
        float(jnp.max(jnp.abs(h - h_ref)))

    print("KERNEL_OK")
</pallas_src>

<mosaic_0001>
module attributes {stable_mosaic.version = 11 : i64} {
  func.func @kernel(%arg0: i32, %arg1: memref<8x16xbf16, #tpu.memory_space<vmem>>, %arg2: memref<8x128xf32, #tpu.memory_space<vmem>>, %arg3: memref<16x128xbf16, #tpu.memory_space<vmem>>, %arg4: memref<128x128xf32, #tpu.memory_space<vmem>>, %arg5: memref<1x128xf32, #tpu.memory_space<vmem>>, %arg6: memref<2x128xf32, #tpu.memory_space<vmem>>, %arg7: memref<128x128xbf16, #tpu.memory_space<vmem>>, %arg8: memref<1x128xf32, #tpu.memory_space<vmem>>, %arg9: memref<8x128xf32, #tpu.memory_space<vmem>>, %arg10: memref<8x128xf32, #tpu.memory_space<vmem>>) attributes {dimension_semantics = [#tpu.dimension_semantics<parallel>], iteration_bounds = array<i64: 1>, scalar_prefetch = 0 : i64, scratch_operands = 0 : i64, tpu.core_type = #tpu.core_type<tc>, window_params = [{transform_indices = @transform_0, window_bounds = array<i64: 8, 16>}, {transform_indices = @transform_1, window_bounds = array<i64: 8, 128>}, {pipeline_mode = #tpu.pipeline_mode<synchronous>, transform_indices = @transform_2, window_bounds = array<i64: 16, 128>}, {pipeline_mode = #tpu.pipeline_mode<synchronous>, transform_indices = @transform_3, window_bounds = array<i64: 128, 128>}, {pipeline_mode = #tpu.pipeline_mode<synchronous>, transform_indices = @transform_4, window_bounds = array<i64: 1, 128>}, {pipeline_mode = #tpu.pipeline_mode<synchronous>, transform_indices = @transform_5, window_bounds = array<i64: 2, 128>}, {pipeline_mode = #tpu.pipeline_mode<synchronous>, transform_indices = @transform_6, window_bounds = array<i64: 128, 128>}, {pipeline_mode = #tpu.pipeline_mode<synchronous>, transform_indices = @transform_7, window_bounds = array<i64: 1, 128>}, {transform_indices = @transform_8, window_bounds = array<i64: 8, 128>}, {transform_indices = @transform_9, window_bounds = array<i64: 8, 128>}]} {
    %c0 = arith.constant 0 : index
    %c0_0 = arith.constant 0 : index
    %0 = vector.load %arg2[%c0, %c0_0] : memref<8x128xf32, #tpu.memory_space<vmem>>, vector<8x128xf32>
    %c0_1 = arith.constant 0 : index
    %c0_2 = arith.constant 0 : index
    %1 = vector.load %arg1[%c0_1, %c0_2] : memref<8x16xbf16, #tpu.memory_space<vmem>>, vector<8x16xbf16>
    %c0_3 = arith.constant 0 : index
    %c0_4 = arith.constant 0 : index
    %2 = vector.load %arg3[%c0_3, %c0_4] : memref<16x128xbf16, #tpu.memory_space<vmem>>, vector<16x128xbf16>
    %cst = arith.constant dense<0.000000e+00> : vector<8x128xf32>
    %3 = tpu.matmul %1, %2, %cst {dimension_numbers = #tpu.dot_dimension_numbers<[1], [0], [0], [1], [0, 0, 1, 1], [], []>} : vector<8x16xbf16>, vector<16x128xbf16>, vector<8x128xf32> -> vector<8x128xf32>
    %c0_5 = arith.constant 0 : index
    %c0_6 = arith.constant 0 : index
    %4 = vector.load %arg4[%c0_5, %c0_6] : memref<128x128xf32, #tpu.memory_space<vmem>>, vector<128x128xf32>
    %cst_7 = arith.constant dense<0.000000e+00> : vector<8x128xf32>
    %5 = tpu.matmul %0, %4, %cst_7 {dimension_numbers = #tpu.dot_dimension_numbers<[1], [0], [0], [1], [0, 0, 1, 1], [], []>} : vector<8x128xf32>, vector<128x128xf32>, vector<8x128xf32> -> vector<8x128xf32>
    %6 = arith.addf %3, %5 : vector<8x128xf32>
    %c0_8 = arith.constant 0 : index
    %c0_9 = arith.constant 0 : index
    %7 = vector.load %arg5[%c0_8, %c0_9] : memref<1x128xf32, #tpu.memory_space<vmem>>, vector<1x128xf32>
    %8 = vector.broadcast %7 : vector<1x128xf32> to vector<8x128xf32>
    %9 = arith.addf %6, %8 : vector<8x128xf32>
    %10 = math.tanh %9 : vector<8x128xf32>
    %c0_10 = arith.constant 0 : index
    %c0_11 = arith.constant 0 : index
    %11 = vector.load %arg6[%c0_10, %c0_11] : memref<2x128xf32, #tpu.memory_space<vmem>>, vector<2x128xf32>
    %12 = vector.extract_strided_slice %11 {offsets = [0, 0], sizes = [1, 128], strides = [1, 1]} : vector<2x128xf32> to vector<1x128xf32>
    %13 = vector.broadcast %12 : vector<1x128xf32> to vector<8x128xf32>
    %14 = arith.mulf %13, %0 : vector<8x128xf32>
    %15 = vector.extract_strided_slice %11 {offsets = [1, 0], sizes = [1, 128], strides = [1, 1]} : vector<2x128xf32> to vector<1x128xf32>
    %16 = vector.broadcast %15 : vector<1x128xf32> to vector<8x128xf32>
    %17 = arith.mulf %16, %10 : vector<8x128xf32>
    %18 = arith.addf %14, %17 : vector<8x128xf32>
    %19 = arith.truncf %18 : vector<8x128xf32> to vector<8x128xbf16>
    %c0_12 = arith.constant 0 : index
    %c0_13 = arith.constant 0 : index
    %20 = vector.load %arg7[%c0_12, %c0_13] : memref<128x128xbf16, #tpu.memory_space<vmem>>, vector<128x128xbf16>
    %cst_14 = arith.constant dense<0.000000e+00> : vector<8x128xf32>
    %21 = tpu.matmul %19, %20, %cst_14 {dimension_numbers = #tpu.dot_dimension_numbers<[1], [0], [0], [1], [0, 0, 1, 1], [], []>} : vector<8x128xbf16>, vector<128x128xbf16>, vector<8x128xf32> -> vector<8x128xf32>
    %c0_15 = arith.constant 0 : index
    %c0_16 = arith.constant 0 : index
    %22 = vector.load %arg8[%c0_15, %c0_16] : memref<1x128xf32, #tpu.memory_space<vmem>>, vector<1x128xf32>
    %23 = vector.broadcast %22 : vector<1x128xf32> to vector<8x128xf32>
    %24 = arith.addf %21, %23 : vector<8x128xf32>
    %c0_17 = arith.constant 0 : index
    %c0_18 = arith.constant 0 : index
    %25 = vector.load %arg9[%c0_17, %c0_18] : memref<8x128xf32, #tpu.memory_space<vmem>>, vector<8x128xf32>
    tpu.vector_store %arg9[%c0_17, %c0_18], %24 {strides = array<i32>} : memref<8x128xf32, #tpu.memory_space<vmem>>, vector<8x128xf32>,
    %c0_19 = arith.constant 0 : index
    %c0_20 = arith.constant 0 : index
    %26 = vector.load %arg10[%c0_19, %c0_20] : memref<8x128xf32, #tpu.memory_space<vmem>>, vector<8x128xf32>
    tpu.vector_store %arg10[%c0_19, %c0_20], %18 {strides = array<i32>} : memref<8x128xf32, #tpu.memory_space<vmem>>, vector<8x128xf32>,
    return
  }
  func.func @transform_0(%arg0: i32) -> (i32, i32) {
    %c0_i32 = arith.constant 0 : i32
    %c0_i32_0 = arith.constant 0 : i32
    return %arg0, %c0_i32 : i32, i32
  }
  func.func @transform_1(%arg0: i32) -> (i32, i32) {
    %c0_i32 = arith.constant 0 : i32
    %c0_i32_0 = arith.constant 0 : i32
    return %arg0, %c0_i32 : i32, i32
  }
  func.func @transform_2(%arg0: i32) -> (i32, i32) {
    %c0_i32 = arith.constant 0 : i32
    %c0_i32_0 = arith.constant 0 : i32
    %c0_i32_1 = arith.constant 0 : i32
    return %c0_i32, %c0_i32_0 : i32, i32
  }
  func.func @transform_3(%arg0: i32) -> (i32, i32) {
    %c0_i32 = arith.constant 0 : i32
    %c0_i32_0 = arith.constant 0 : i32
    %c0_i32_1 = arith.constant 0 : i32
    return %c0_i32, %c0_i32_0 : i32, i32
  }
  func.func @transform_4(%arg0: i32) -> (i32, i32) {
    %c0_i32 = arith.constant 0 : i32
    %c0_i32_0 = arith.constant 0 : i32
    %c0_i32_1 = arith.constant 0 : i32
    return %c0_i32, %c0_i32_0 : i32, i32
  }
  func.func @transform_5(%arg0: i32) -> (i32, i32) {
    %c0_i32 = arith.constant 0 : i32
    %c0_i32_0 = arith.constant 0 : i32
    %c0_i32_1 = arith.constant 0 : i32
    return %c0_i32, %c0_i32_0 : i32, i32
  }
  func.func @transform_6(%arg0: i32) -> (i32, i32) {
    %c0_i32 = arith.constant 0 : i32
    %c0_i32_0 = arith.constant 0 : i32
    %c0_i32_1 = arith.constant 0 : i32
    return %c0_i32, %c0_i32_0 : i32, i32
  }
  func.func @transform_7(%arg0: i32) -> (i32, i32) {
    %c0_i32 = arith.constant 0 : i32
    %c0_i32_0 = arith.constant 0 : i32
    %c0_i32_1 = arith.constant 0 : i32
    return %c0_i32, %c0_i32_0 : i32, i32
  }
  func.func @transform_8(%arg0: i32) -> (i32, i32) {
    %c0_i32 = arith.constant 0 : i32
    %c0_i32_0 = arith.constant 0 : i32
    return %arg0, %c0_i32 : i32, i32
  }
  func.func @transform_9(%arg0: i32) -> (i32, i32) {
    %c0_i32 = arith.constant 0 : i32
    %c0_i32_0 = arith.constant 0 : i32
    return %arg0, %c0_i32 : i32, i32
  }
}

module attributes {stable_mosaic.version = 11 : i64} {
  func.func @kernel(%arg0: i32, %arg1: memref<8x16xbf16, #tpu.memory_space<vmem>>, %arg2: memref<8x128xf32, #tpu.memory_space<vmem>>, %arg3: memref<16x128xbf16, #tpu.memory_space<vmem>>, %arg4: memref<128x128xf32, #tpu.memory_space<vmem>>, %arg5: memref<1x128xf32, #tpu.memory_space<vmem>>, %arg6: memref<2x128xf32, #tpu.memory_space<vmem>>, %arg7: memref<128x128xbf16, #tpu.memory_space<vmem>>, %arg8: memref<1x128xf32, #tpu.memory_space<vmem>>, %arg9: memref<8x128xf32, #tpu.memory_space<vmem>>, %arg10: memref<8x128xf32, #tpu.memory_space<vmem>>) attributes {dimension_semantics = [#tpu.dimension_semantics<parallel>], iteration_bounds = array<i64: 1>, scalar_prefetch = 0 : i64, scratch_operands = 0 : i64, tpu.core_type = #tpu.core_type<tc>, window_params = [{transform_indices = @transform_0, window_bounds = array<i64: 8, 16>}, {transform_indices = @transform_1, window_bounds = array<i64: 8, 128>}, {pipeline_mode = #tpu.pipeline_mode<synchronous>, transform_indices = @transform_2, window_bounds = array<i64: 16, 128>}, {pipeline_mode = #tpu.pipeline_mode<synchronous>, transform_indices = @transform_3, window_bounds = array<i64: 128, 128>}, {pipeline_mode = #tpu.pipeline_mode<synchronous>, transform_indices = @transform_4, window_bounds = array<i64: 1, 128>}, {pipeline_mode = #tpu.pipeline_mode<synchronous>, transform_indices = @transform_5, window_bounds = array<i64: 2, 128>}, {pipeline_mode = #tpu.pipeline_mode<synchronous>, transform_indices = @transform_6, window_bounds = array<i64: 128, 128>}, {pipeline_mode = #tpu.pipeline_mode<synchronous>, transform_indices = @transform_7, window_bounds = array<i64: 1, 128>}, {transform_indices = @transform_8, window_bounds = array<i64: 8, 128>}, {transform_indices = @transform_9, window_bounds = array<i64: 8, 128>}]} {
    %c0 = arith.constant 0 : index
    %c0_0 = arith.constant 0 : index
    %0 = vector.load %arg2[%c0, %c0_0] : memref<8x128xf32, #tpu.memory_space<vmem>>, vector<8x128xf32>
    %c0_1 = arith.constant 0 : index
    %c0_2 = arith.constant 0 : index
    %1 = vector.load %arg1[%c0_1, %c0_2] : memref<8x16xbf16, #tpu.memory_space<vmem>>, vector<8x16xbf16>
    %c0_3 = arith.constant 0 : index
    %c0_4 = arith.constant 0 : index
    %2 = vector.load %arg3[%c0_3, %c0_4] : memref<16x128xbf16, #tpu.memory_space<vmem>>, vector<16x128xbf16>
    %cst = arith.constant dense<0.000000e+00> : vector<8x128xf32>
    %3 = tpu.matmul %1, %2, %cst {dimension_numbers = #tpu.dot_dimension_numbers<[1], [0], [0], [1], [0, 0, 1, 1], [], []>} : vector<8x16xbf16>, vector<16x128xbf16>, vector<8x128xf32> -> vector<8x128xf32>
    %c0_5 = arith.constant 0 : index
    %c0_6 = arith.constant 0 : index
    %4 = vector.load %arg4[%c0_5, %c0_6] : memref<128x128xf32, #tpu.memory_space<vmem>>, vector<128x128xf32>
    %cst_7 = arith.constant dense<0.000000e+00> : vector<8x128xf32>
    %5 = tpu.matmul %0, %4, %cst_7 {dimension_numbers = #tpu.dot_dimension_numbers<[1], [0], [0], [1], [0, 0, 1, 1], [], []>} : vector<8x128xf32>, vector<128x128xf32>, vector<8x128xf32> -> vector<8x128xf32>
    %6 = arith.addf %3, %5 : vector<8x128xf32>
    %c0_8 = arith.constant 0 : index
    %c0_9 = arith.constant 0 : index
    %7 = vector.load %arg5[%c0_8, %c0_9] : memref<1x128xf32, #tpu.memory_space<vmem>>, vector<1x128xf32>
    %8 = vector.broadcast %7 : vector<1x128xf32> to vector<8x128xf32>
    %9 = arith.addf %6, %8 : vector<8x128xf32>
    %10 = math.tanh %9 : vector<8x128xf32>
    %c0_10 = arith.constant 0 : index
    %c0_11 = arith.constant 0 : index
    %11 = vector.load %arg6[%c0_10, %c0_11] : memref<2x128xf32, #tpu.memory_space<vmem>>, vector<2x128xf32>
    %12 = vector.extract_strided_slice %11 {offsets = [0, 0], sizes = [1, 128], strides = [1, 1]} : vector<2x128xf32> to vector<1x128xf32>
    %13 = vector.broadcast %12 : vector<1x128xf32> to vector<8x128xf32>
    %14 = arith.mulf %13, %0 : vector<8x128xf32>
    %15 = vector.extract_strided_slice %11 {offsets = [1, 0], sizes = [1, 128], strides = [1, 1]} : vector<2x128xf32> to vector<1x128xf32>
    %16 = vector.broadcast %15 : vector<1x128xf32> to vector<8x128xf32>
    %17 = arith.mulf %16, %10 : vector<8x128xf32>
    %18 = arith.addf %14, %17 : vector<8x128xf32>
    %19 = arith.truncf %18 : vector<8x128xf32> to vector<8x128xbf16>
    %c0_12 = arith.constant 0 : index
    %c0_13 = arith.constant 0 : index
    %20 = vector.load %arg7[%c0_12, %c0_13] : memref<128x128xbf16, #tpu.memory_space<vmem>>, vector<128x128xbf16>
    %cst_14 = arith.constant dense<0.000000e+00> : vector<8x128xf32>
    %21 = tpu.matmul %19, %20, %cst_14 {dimension_numbers = #tpu.dot_dimension_numbers<[1], [0], [0], [1], [0, 0, 1, 1], [], []>} : vector<8x128xbf16>, vector<128x128xbf16>, vector<8x128xf32> -> vector<8x128xf32>
    %c0_15 = arith.constant 0 : index
    %c0_16 = arith.constant 0 : index
    %22 = vector.load %arg8[%c0_15, %c0_16] : memref<1x128xf32, #tpu.memory_space<vmem>>, vector<1x128xf32>
    %23 = vector.broadcast %22 : vector<1x128xf32> to vector<8x128xf32>
    %24 = arith.addf %21, %23 : vector<8x128xf32>
    %c0_17 = arith.constant 0 : index
    %c0_18 = arith.constant 0 : index
    %25 = vector.load %arg9[%c0_17, %c0_18] : memref<8x128xf32, #tpu.memory_space<vmem>>, vector<8x128xf32>
    tpu.vector_store %arg9[%c0_17, %c0_18], %24 {strides = array<i32>} : memref<8x128xf32, #tpu.memory_space<vmem>>, vector<8x128xf32>,
    %c0_19 = arith.constant 0 : index
    %c0_20 = arith.constant 0 : index
    %26 = vector.load %arg10[%c0_19, %c0_20] : memref<8x128xf32, #tpu.memory_space<vmem>>, vector<8x128xf32>
    tpu.vector_store %arg10[%c0_19, %c0_20], %18 {strides = array<i32>} : memref<8x128xf32, #tpu.memory_space<vmem>>, vector<8x128xf32>,
    return
  }
  func.func @transform_0(%arg0: i32) -> (i32, i32) {
    %c0_i32 = arith.constant 0 : i32
    %c0_i32_0 = arith.constant 0 : i32
    return %arg0, %c0_i32 : i32, i32
  }
  func.func @transform_1(%arg0: i32) -> (i32, i32) {
    %c0_i32 = arith.constant 0 : i32
    %c0_i32_0 = arith.constant 0 : i32
    return %arg0, %c0_i32 : i32, i32
  }
  func.func @transform_2(%arg0: i32) -> (i32, i32) {
    %c0_i32 = arith.constant 0 : i32
    %c0_i32_0 = arith.constant 0 : i32
    %c0_i32_1 = arith.constant 0 : i32
    return %c0_i32, %c0_i32_0 : i32, i32
  }
  func.func @transform_3(%arg0: i32) -> (i32, i32) {
    %c0_i32 = arith.constant 0 : i32
    %c0_i32_0 = arith.constant 0 : i32
    %c0_i32_1 = arith.constant 0 : i32
    return %c0_i32, %c0_i32_0 : i32, i32
  }
  func.func @transform_4(%arg0: i32) -> (i32, i32) {
    %c0_i32 = arith.constant 0 : i32
    %c0_i32_0 = arith.constant 0 : i32
    %c0_i32_1 = arith.constant 0 : i32
    return %c0_i32, %c0_i32_0 : i32, i32
  }
  func.func @transform_5(%arg0: i32) -> (i32, i32) {
    %c0_i32 = arith.constant 0 : i32
    %c0_i32_0 = arith.constant 0 : i32
    %c0_i32_1 = arith.constant 0 : i32
    return %c0_i32, %c0_i32_0 : i32, i32
  }
  func.func @transform_6(%arg0: i32) -> (i32, i32) {
    %c0_i32 = arith.constant 0 : i32
    %c0_i32_0 = arith.constant 0 : i32
    %c0_i32_1 = arith.constant 0 : i32
    return %c0_i32, %c0_i32_0 : i32, i32
  }
  func.func @transform_7(%arg0: i32) -> (i32, i32) {
    %c0_i32 = arith.constant 0 : i32
    %c0_i32_0 = arith.constant 0 : i32
    %c0_i32_1 = arith.constant 0 : i32
    return %c0_i32, %c0_i32_0 : i32, i32
  }
  func.func @transform_8(%arg0: i32) -> (i32, i32) {
    %c0_i32 = arith.constant 0 : i32
    %c0_i32_0 = arith.constant 0 : i32
    return %arg0, %c0_i32 : i32, i32
  }
  func.func @transform_9(%arg0: i32) -> (i32, i32) {
    %c0_i32 = arith.constant 0 : i32
    %c0_i32_0 = arith.constant 0 : i32
    return %arg0, %c0_i32 : i32, i32
  }
}

</mosaic_0001>

<llo_original>
// kernel: tpu_custom_call.1
$region0: #{tpu_custom_call.1}
  #allocation0 [shape = 'u32[]', space=smem, size = 0x4, offset = 0x4, fixed_abs, tag = 'smem constant byte address 0x4 - core index']
  #allocation1 [shape = 'u32[72,128]{1,0:T(1,128)}', space=vmem, size = 0x9000, scoped, tag = 'internal scratch']
  %s0 = inlined_call_operand.hbm [shape: bf16[8,16], index: 0, kind: input, shape index: {}]
  %s1 = inlined_call_operand.hbm [shape: f32[8,128], index: 1, kind: input, shape index: {}]
  %s2 = inlined_call_operand.hbm [shape: bf16[16,128], index: 2, kind: input, shape index: {}]
  %s3 = inlined_call_operand.hbm [shape: f32[128,128], index: 3, kind: input, shape index: {}]
  %s4 = inlined_call_operand.vmem [shape: f32[1,128], index: 4, kind: input, shape index: {}]
  %s5 = inlined_call_operand.vmem [shape: f32[2,128], index: 5, kind: input, shape index: {}]
  %s6 = inlined_call_operand.hbm [shape: bf16[128,128], index: 6, kind: input, shape index: {}]
  %s7 = inlined_call_operand.vmem [shape: f32[1,128], index: 7, kind: input, shape index: {}]
  %s8 = inlined_call_operand.hbm [shape: f32[8,128], index: 8, kind: output, shape index: {0}]
  %s9 = inlined_call_operand.hbm [shape: f32[8,128], index: 9, kind: output, shape index: {1}]
  %10 = xla_tuple %s8, %s9
  %s11 = sld [smem:[#allocation0]]
  $region70: #{tpu_custom_call.1} parent=0
    _
  %s13 = ssub.s32 1, %s11
  %s14 = scalar_select 0, %s13, %s11
  $region1: #{tpu_custom_call.1} parent=0
    #allocation2 [shape = 'u8[2048]{0}', space=vmem, size = 0x800, scoped, tag = 'input window, operand 0, single buffered']
    #allocation3 [shape = 's32[1]{0}', space=sflag, size = 0x4, scoped, tag = 'scoped memory for tpu_custom_call.1']
    #allocation4 [shape = 's32[1]{0}', space=sflag, size = 0x4, scoped, tag = 'scoped memory for tpu_custom_call.1']
    #allocation5 [shape = 'u8[4096]{0}', space=vmem, size = 0x1000, scoped, tag = 'input window, operand 1, single buffered']
    #allocation6 [shape = 's32[1]{0}', space=sflag, size = 0x4, scoped, tag = 'scoped memory for tpu_custom_call.1']
    #allocation7 [shape = 'u8[4096]{0}', space=vmem, size = 0x1000, scoped, tag = 'input window, operand 2, single buffered']
    #allocation8 [shape = 'u8[65536]{0}', space=vmem, size = 0x10000, scoped, tag = 'input window, operand 3, single buffered']
    #allocation9 [shape = 's32[1]{0}', space=sflag, size = 0x4, scoped, tag = 'scoped memory for tpu_custom_call.1']
    #allocation10 [shape = 'u8[32768]{0}', space=vmem, size = 0x8000, scoped, tag = 'input window, operand 6, single buffered']
    #allocation11 [shape = 'u8[4096]{0}', space=vmem, size = 0x1000, scoped, tag = 'output window, operand 0, single buffered']
    #allocation12 [shape = 'u8[4096]{0}', space=vmem, size = 0x1000, scoped, tag = 'output window, operand 1, single buffered']
    #allocation13 [shape = 's32[1]{0}', space=sflag, size = 0x4, scoped, tag = 'scoped memory for tpu_custom_call.1']
    %15 = vsyncpa [#allocation3], 0
    %16 = vsyncpa [#allocation6], 0
    %17 = vsyncpa [#allocation9], 0
    %18 = vsyncpa [#allocation4], 0
    %19 = vsyncpa [#allocation13], 0
    // Predicated region
    $region2: #{tpu_custom_call.1} parent=1 // pred_check
      _
    $region3: #{tpu_custom_call.1} parent=1 // pred_check_branch
      %21 = sbr.rel (0) target = $region5
    $region4: #{tpu_custom_call.1} parent=1 // pred_region
      %23 = vsyncadd [#allocation3], 0
      %s25 = sshll.u32 %s0, 4
      %s26 = int_to_ptr.hbm [resolvable:$true] %s25
      %s27 = sshll.u32 [#allocation2], 4
      %s28 = int_to_ptr.vmem [resolvable:$true] %s27
      %30 = dma.hbm_to_vmem [thread:$0]  %s26, 64, %s28, [#allocation3]
    $region5: #{tpu_custom_call.1} parent=1 // pred_fallthru
      _
    // Predicated region
    $region6: #{tpu_custom_call.1} parent=1 // pred_check
      _
    $region7: #{tpu_custom_call.1} parent=1 // pred_check_branch
      %32 = sbr.rel (0) target = $region9
    $region8: #{tpu_custom_call.1} parent=1 // pred_region
      %34 = vsyncadd [#allocation6], 0
      %s36 = sshll.u32 %s1, 4
      %s37 = int_to_ptr.hbm [resolvable:$true] %s36
      %s38 = sshll.u32 [#allocation5], 4
      %s39 = int_to_ptr.vmem [resolvable:$true] %s38
      %41 = dma.hbm_to_vmem [thread:$0]  %s37, 128, %s39, [#allocation6]
    $region9: #{tpu_custom_call.1} parent=1 // pred_fallthru
      _
    // Predicated region
    $region10: #{tpu_custom_call.1} parent=1 // pred_check
      _
    $region11: #{tpu_custom_call.1} parent=1 // pred_check_branch
      %43 = sbr.rel (0) target = $region13
    $region12: #{tpu_custom_call.1} parent=1 // pred_region
      %45 = vsyncadd [#allocation6], 0
      %s46 = sshll.u32 %s2, 4
      %s47 = int_to_ptr.hbm [resolvable:$true] %s46
      %s48 = sshll.u32 [#allocation7], 4
      %s49 = int_to_ptr.vmem [resolvable:$true] %s48
      %54 = dma.hbm_to_vmem [thread:$0]  %s47, 128, %s49, [#allocation6], 64, 64, 4
    $region13: #{tpu_custom_call.1} parent=1 // pred_fallthru
      _
    // Predicated region
    $region14: #{tpu_custom_call.1} parent=1 // pred_check
      _
    $region15: #{tpu_custom_call.1} parent=1 // pred_check_branch
      %56 = sbr.rel (0) target = $region17
    $region16: #{tpu_custom_call.1} parent=1 // pred_region
      %58 = vsyncadd [#allocation9], 0
      %s59 = sshll.u32 %s3, 4
      %s60 = int_to_ptr.hbm [resolvable:$true] %s59
      %s61 = sshll.u32 [#allocation8], 4
      %s62 = int_to_ptr.vmem [resolvable:$true] %s61
      %67 = dma.hbm_to_vmem [thread:$0]  %s60, 2048, %s62, [#allocation9], 128, 128, 8
    $region17: #{tpu_custom_call.1} parent=1 // pred_fallthru
      _
    // Predicated region
    $region18: #{tpu_custom_call.1} parent=1 // pred_check
      _
    $region19: #{tpu_custom_call.1} parent=1 // pred_check_branch
      %69 = sbr.rel (0) target = $region21
    $region20: #{tpu_custom_call.1} parent=1 // pred_region
      _
    $region21: #{tpu_custom_call.1} parent=1 // pred_fallthru
      _
    // Predicated region
    $region22: #{tpu_custom_call.1} parent=1 // pred_check
      _
    $region23: #{tpu_custom_call.1} parent=1 // pred_check_branch
      %71 = sbr.rel (0) target = $region25
    $region24: #{tpu_custom_call.1} parent=1 // pred_region
      _
    $region25: #{tpu_custom_call.1} parent=1 // pred_fallthru
      _
    // Predicated region
    $region26: #{tpu_custom_call.1} parent=1 // pred_check
      _
    $region27: #{tpu_custom_call.1} parent=1 // pred_check_branch
      %73 = sbr.rel (0) target = $region29
    $region28: #{tpu_custom_call.1} parent=1 // pred_region
      %75 = vsyncadd [#allocation9], 0
      %s76 = sshll.u32 %s6, 4
      %s77 = int_to_ptr.hbm [resolvable:$true] %s76
      %s78 = sshll.u32 [#allocation10], 4
      %s79 = int_to_ptr.vmem [resolvable:$true] %s78
      %84 = dma.hbm_to_vmem [thread:$0]  %s77, 1024, %s79, [#allocation9], 64, 64, 4
    $region29: #{tpu_custom_call.1} parent=1 // pred_fallthru
      _
    // Predicated region
    $region30: #{tpu_custom_call.1} parent=1 // pred_check
      _
    $region31: #{tpu_custom_call.1} parent=1 // pred_check_branch
      %86 = sbr.rel (0) target = $region33
    $region32: #{tpu_custom_call.1} parent=1 // pred_region
      _
    $region33: #{tpu_custom_call.1} parent=1 // pred_fallthru
      _
    // Predicated region
    $region34: #{tpu_custom_call.1} parent=1 // pred_check
      _
    $region35: #{tpu_custom_call.1} parent=1 // pred_check_branch
      %88 = sbr.rel (0) target = $region37
    $region36: #{tpu_custom_call.1} parent=1 // pred_region
      %90 = dma.done [#allocation3], 64
    $region37: #{tpu_custom_call.1} parent=1 // pred_fallthru
      _
    // Predicated region
    $region38: #{tpu_custom_call.1} parent=1 // pred_check
      _
    $region39: #{tpu_custom_call.1} parent=1 // pred_check_branch
      %92 = sbr.rel (0) target = $region41
    $region40: #{tpu_custom_call.1} parent=1 // pred_region
      %94 = dma.done [#allocation6], 128
    $region41: #{tpu_custom_call.1} parent=1 // pred_fallthru
      _
    // Predicated region
    $region42: #{tpu_custom_call.1} parent=1 // pred_check
      _
    $region43: #{tpu_custom_call.1} parent=1 // pred_check_branch
      %96 = sbr.rel (0) target = $region45
    $region44: #{tpu_custom_call.1} parent=1 // pred_region
      %98 = dma.done [#allocation6], 128
    $region45: #{tpu_custom_call.1} parent=1 // pred_fallthru
      _
    // Predicated region
    $region46: #{tpu_custom_call.1} parent=1 // pred_check
      _
    $region47: #{tpu_custom_call.1} parent=1 // pred_check_branch
      %100 = sbr.rel (0) target = $region49
    $region48: #{tpu_custom_call.1} parent=1 // pred_region
      %102 = dma.done [#allocation9], 2048
    $region49: #{tpu_custom_call.1} parent=1 // pred_fallthru
      _
    // Predicated region
    $region50: #{tpu_custom_call.1} parent=1 // pred_check
      _
    $region51: #{tpu_custom_call.1} parent=1 // pred_check_branch
      %104 = sbr.rel (0) target = $region53
    $region52: #{tpu_custom_call.1} parent=1 // pred_region
      %106 = dma.done [#allocation9], 1024
    $region53: #{tpu_custom_call.1} parent=1 // pred_fallthru
      _
    %v108 = vld [vmem:[#allocation5] sm:$0xff]
    %v109 = vld [vmem:[#allocation2] sm:$0xf]
    %v110 = vld [vmem:[#allocation7] sm:$0xf]
    %v111 = vld [vmem:[#allocation7 + $0x4] sm:$0xf]
    %v112 = vld [vmem:[#allocation8] sm:$0xff]
    %v113 = vld [vmem:[#allocation8 + $0x8] sm:$0xff]
    %v114 = vld [vmem:[#allocation8 + $0x10] sm:$0xff]
    %v115 = vld [vmem:[#allocation8 + $0x18] sm:$0xff]
    %v116 = vld [vmem:[#allocation8 + $0x20] sm:$0xff]
    %v117 = vld [vmem:[#allocation8 + $0x28] sm:$0xff]
    %v118 = vld [vmem:[#allocation8 + $0x30] sm:$0xff]
    %v119 = vld [vmem:[#allocation8 + $0x38] sm:$0xff]
    %v120 = vld [vmem:[#allocation8 + $0x40] sm:$0xff]
    %v121 = vld [vmem:[#allocation8 + $0x48] sm:$0xff]
    %v122 = vld [vmem:[#allocation8 + $0x50] sm:$0xff]
    %v123 = vld [vmem:[#allocation8 + $0x58] sm:$0xff]
    %v124 = vld [vmem:[#allocation8 + $0x60] sm:$0xff]
    %v125 = vld [vmem:[#allocation8 + $0x68] sm:$0xff]
    %v126 = vld [vmem:[#allocation8 + $0x70] sm:$0xff]
    %v127 = vld [vmem:[#allocation8 + $0x78] sm:$0xff]
    %128 = vmatpush.msra.mxu0 %v127
    %129 = vmatpush.msra.mxu0 %v126
    %130 = vmatpush.msra.mxu0 %v125
    %131 = vmatpush.msra.mxu0 %v124
    %132 = vmatpush.msra.mxu0 %v123
    %133 = vmatpush.msra.mxu0 %v122
    %134 = vmatpush.msra.mxu0 %v121
    %135 = vmatpush.msra.mxu0 %v120
    %136 = vmatpush.msra.mxu0 %v119
    %137 = vmatpush.msra.mxu0 %v118
    %138 = vmatpush.msra.mxu0 %v117
    %139 = vmatpush.msra.mxu0 %v116
    %140 = vmatpush.msra.mxu0 %v115
    %141 = vmatpush.msra.mxu0 %v114
    %142 = vmatpush.msra.mxu0 %v113
    %143 = vmatpush.msra.mxu0 %v112
    %144 = vmatmul.f32.gmra.mxu0 %v108
    %v145 = vpop.f32.mrf.mxu0
    %v146 = vadd.f32 0.0, %v145
    %147 = vdwg.mxu0
    %v150 = vunpack.c.l.b16 %v110
    %v151 = vunpack.c.l.b16 %v111
    %v152 = vpack.c.b16 %v151, %v150
    %vm154 = vcmask 130048
    %v156 = vsel %vm154, %v109, 0
    %158 = vmatpush.bf16.msra.mxu0 0
    %159 = vmatpush.bf16.msra.mxu0 0
    %160 = vmatpush.bf16.msra.mxu0 0
    %161 = vmatpush.bf16.msra.mxu0 0
    %162 = vmatpush.bf16.msra.mxu0 0
    %163 = vmatpush.bf16.msra.mxu0 0
    %164 = vmatpush.bf16.msra.mxu0 0
    %165 = vmatpush.bf16.msra.mxu0 %v152
    %166 = vmatmul.bf16.gmra.mxu0 %v156
    %v167 = vpop.f32.mrf.mxu0
    %v168 = vadd.f32 %v146, %v167
    %v169 = vpop.f32.mrf.mxu0
    %170 = vdwg.mxu0
    %v171 = vld [vmem:[%s4] sm:$0x1]
    %v173 = vperm.slane %v171, 0
    %v175 = vadd.f32 %v168, %v173
    %v176 = vtanh.pop %v175
    %v177 = vld [vmem:[%s5] sm:$0x3]
    %v178 = vperm.slane %v177, 0
    %v179 = vmul.f32 %v178, %v108
    %v180 = vperm.slane %v177, 1
    %v181 = vmul.f32 %v180, %v176
    %v182 = vadd.f32 %v179, %v181
    %v183 = vpack.c.bf16 %v182, %v182
    %v184 = vld [vmem:[#allocation10] sm:$0xf]
    %v185 = vld [vmem:[#allocation10 + $0x4] sm:$0xf]
    %v186 = vld [vmem:[#allocation10 + $0x8] sm:$0xf]
    %v187 = vld [vmem:[#allocation10 + $0xc] sm:$0xf]
    %v188 = vld [vmem:[#allocation10 + $0x10] sm:$0xf]
    %v189 = vld [vmem:[#allocation10 + $0x14] sm:$0xf]
    %v190 = vld [vmem:[#allocation10 + $0x18] sm:$0xf]
    %v191 = vld [vmem:[#allocation10 + $0x1c] sm:$0xf]
    %v192 = vld [vmem:[#allocation10 + $0x20] sm:$0xf]
    %v193 = vld [vmem:[#allocation10 + $0x24] sm:$0xf]
    %v194 = vld [vmem:[#allocation10 + $0x28] sm:$0xf]
    %v195 = vld [vmem:[#allocation10 + $0x2c] sm:$0xf]
    %v196 = vld [vmem:[#allocation10 + $0x30] sm:$0xf]
    %v197 = vld [vmem:[#allocation10 + $0x34] sm:$0xf]
    %v198 = vld [vmem:[#allocation10 + $0x38] sm:$0xf]
    %v199 = vld [vmem:[#allocation10 + $0x3c] sm:$0xf]
    %v200 = vld [vmem:[%s7] sm:$0x1]
    %v202 = vperm.slane %v200, 0
    %v220 = vunpack.c.l.b16 %v184
    %v221 = vunpack.c.l.b16 %v185
    %v222 = vunpack.c.l.b16 %v186
    %v223 = vunpack.c.l.b16 %v187
    %v224 = vunpack.c.l.b16 %v188
    %v225 = vunpack.c.l.b16 %v189
    %v226 = vunpack.c.l.b16 %v190
    %v227 = vunpack.c.l.b16 %v191
    %v228 = vunpack.c.l.b16 %v192
    %v229 = vunpack.c.l.b16 %v193
    %v230 = vunpack.c.l.b16 %v194
    %v231 = vunpack.c.l.b16 %v195
    %v232 = vunpack.c.l.b16 %v196
    %v233 = vunpack.c.l.b16 %v197
    %v234 = vunpack.c.l.b16 %v198
    %v235 = vunpack.c.l.b16 %v199
    %v236 = vpack.c.b16 %v221, %v220
    %v237 = vpack.c.b16 %v223, %v222
    %v238 = vpack.c.b16 %v225, %v224
    %v239 = vpack.c.b16 %v227, %v226
    %v240 = vpack.c.b16 %v229, %v228
    %v241 = vpack.c.b16 %v231, %v230
    %v242 = vpack.c.b16 %v233, %v232
    %v243 = vpack.c.b16 %v235, %v234
    %252 = vmatpush.bf16.msra.mxu0 %v243
    %253 = vmatpush.bf16.msra.mxu0 %v242
    %254 = vmatpush.bf16.msra.mxu0 %v241
    %255 = vmatpush.bf16.msra.mxu0 %v240
    %256 = vmatpush.bf16.msra.mxu0 %v239
    %257 = vmatpush.bf16.msra.mxu0 %v238
    %258 = vmatpush.bf16.msra.mxu0 %v237
    %259 = vmatpush.bf16.msra.mxu0 %v236
    %260 = vmatmul.bf16.gmra.mxu0 %v183
    %v261 = vpop.f32.mrf.mxu0
    %v262 = vadd.f32 %v202, %v261
    %v263 = vpop.f32.mrf.mxu0
    %264 = vdwg.mxu0
    %265 = vst [vmem:[#allocation11] sm:$0xff] %v262
    %266 = vst [vmem:[#allocation12] sm:$0xff] %v182
    // Predicated region
    $region54: #{tpu_custom_call.1} parent=1 // pred_check
      _
    $region55: #{tpu_custom_call.1} parent=1 // pred_check_branch
      %268 = sbr.rel (0) target = $region57
    $region56: #{tpu_custom_call.1} parent=1 // pred_region
      %270 = vsyncadd [#allocation4], 0
      %s272 = sshll.u32 [#allocation11], 4
      %s273 = int_to_ptr.vmem [resolvable:$true] %s272
      %s274 = sshll.u32 %s8, 4
      %s275 = int_to_ptr.hbm [resolvable:$true] %s274
      %277 = dma.vmem_to_hbm [thread:$0]  %s273, 128, %s275, [#allocation4]
    $region57: #{tpu_custom_call.1} parent=1 // pred_fallthru
      _
    // Predicated region
    $region58: #{tpu_custom_call.1} parent=1 // pred_check
      _
    $region59: #{tpu_custom_call.1} parent=1 // pred_check_branch
      %279 = sbr.rel (0) target = $region61
    $region60: #{tpu_custom_call.1} parent=1 // pred_region
      %281 = vsyncadd [#allocation13], 0
      %s283 = sshll.u32 [#allocation12], 4
      %s284 = int_to_ptr.vmem [resolvable:$true] %s283
      %s285 = sshll.u32 %s9, 4
      %s286 = int_to_ptr.hbm [resolvable:$true] %s285
      %288 = dma.vmem_to_hbm [thread:$0]  %s284, 128, %s286, [#allocation13]
    $region61: #{tpu_custom_call.1} parent=1 // pred_fallthru
      _
    // Predicated region
    $region62: #{tpu_custom_call.1} parent=1 // pred_check
      _
    $region63: #{tpu_custom_call.1} parent=1 // pred_check_branch
      %290 = sbr.rel (0) target = $region65
    $region64: #{tpu_custom_call.1} parent=1 // pred_region
      %292 = dma.done [#allocation4], 128
    $region65: #{tpu_custom_call.1} parent=1 // pred_fallthru
      _
    // Predicated region
    $region66: #{tpu_custom_call.1} parent=1 // pred_check
      _
    $region67: #{tpu_custom_call.1} parent=1 // pred_check_branch
      %294 = sbr.rel (0) target = $region69
    $region68: #{tpu_custom_call.1} parent=1 // pred_region
      %296 = dma.done [#allocation13], 128
    $region69: #{tpu_custom_call.1} parent=1 // pred_fallthru
      _
    %297 = vsyncpa [#allocation3], 1
    %298 = vsyncpa [#allocation6], 1
    %299 = vsyncpa [#allocation9], 1
    %300 = vsyncpa [#allocation4], 1
    %301 = vsyncpa [#allocation13], 1

// kernel: tpu_custom_call.1
$region0: #{tpu_custom_call.1}
  #allocation0 [shape = 'u32[]', space=smem, size = 0x4, offset = 0x4, fixed_abs, tag = 'smem constant byte address 0x4 - core index']
  #allocation1 [shape = 'u32[72,128]{1,0:T(1,128)}', space=vmem, size = 0x9000, scoped, tag = 'internal scratch']
  %s0 = inlined_call_operand.hbm [shape: bf16[8,16], index: 0, kind: input, shape index: {}]
  %s1 = inlined_call_operand.hbm [shape: f32[8,128], index: 1, kind: input, shape index: {}]
  %s2 = inlined_call_operand.hbm [shape: bf16[16,128], index: 2, kind: input, shape index: {}]
  %s3 = inlined_call_operand.hbm [shape: f32[128,128], index: 3, kind: input, shape index: {}]
  %s4 = inlined_call_operand.vmem [shape: f32[1,128], index: 4, kind: input, shape index: {}]
  %s5 = inlined_call_operand.vmem [shape: f32[2,128], index: 5, kind: input, shape index: {}]
  %s6 = inlined_call_operand.hbm [shape: bf16[128,128], index: 6, kind: input, shape index: {}]
  %s7 = inlined_call_operand.vmem [shape: f32[1,128], index: 7, kind: input, shape index: {}]
  %s8 = inlined_call_operand.hbm [shape: f32[8,128], index: 8, kind: output, shape index: {0}]
  %s9 = inlined_call_operand.hbm [shape: f32[8,128], index: 9, kind: output, shape index: {1}]
  %10 = xla_tuple %s8, %s9
  %s11 = sld [smem:[#allocation0]]
  $region70: #{tpu_custom_call.1} parent=0
    _
  %s13 = ssub.s32 1, %s11
  %s14 = scalar_select 0, %s13, %s11
  $region1: #{tpu_custom_call.1} parent=0
    #allocation2 [shape = 'u8[2048]{0}', space=vmem, size = 0x800, scoped, tag = 'input window, operand 0, single buffered']
    #allocation3 [shape = 's32[1]{0}', space=sflag, size = 0x4, scoped, tag = 'scoped memory for tpu_custom_call.1']
    #allocation4 [shape = 's32[1]{0}', space=sflag, size = 0x4, scoped, tag = 'scoped memory for tpu_custom_call.1']
    #allocation5 [shape = 'u8[4096]{0}', space=vmem, size = 0x1000, scoped, tag = 'input window, operand 1, single buffered']
    #allocation6 [shape = 's32[1]{0}', space=sflag, size = 0x4, scoped, tag = 'scoped memory for tpu_custom_call.1']
    #allocation7 [shape = 'u8[4096]{0}', space=vmem, size = 0x1000, scoped, tag = 'input window, operand 2, single buffered']
    #allocation8 [shape = 'u8[65536]{0}', space=vmem, size = 0x10000, scoped, tag = 'input window, operand 3, single buffered']
    #allocation9 [shape = 's32[1]{0}', space=sflag, size = 0x4, scoped, tag = 'scoped memory for tpu_custom_call.1']
    #allocation10 [shape = 'u8[32768]{0}', space=vmem, size = 0x8000, scoped, tag = 'input window, operand 6, single buffered']
    #allocation11 [shape = 'u8[4096]{0}', space=vmem, size = 0x1000, scoped, tag = 'output window, operand 0, single buffered']
    #allocation12 [shape = 'u8[4096]{0}', space=vmem, size = 0x1000, scoped, tag = 'output window, operand 1, single buffered']
    #allocation13 [shape = 's32[1]{0}', space=sflag, size = 0x4, scoped, tag = 'scoped memory for tpu_custom_call.1']
    %15 = vsyncpa [#allocation3], 0
    %16 = vsyncpa [#allocation6], 0
    %17 = vsyncpa [#allocation9], 0
    %18 = vsyncpa [#allocation4], 0
    %19 = vsyncpa [#allocation13], 0
    // Predicated region
    $region2: #{tpu_custom_call.1} parent=1 // pred_check
      _
    $region3: #{tpu_custom_call.1} parent=1 // pred_check_branch
      %21 = sbr.rel (0) target = $region5
    $region4: #{tpu_custom_call.1} parent=1 // pred_region
      %23 = vsyncadd [#allocation3], 0
      %s25 = sshll.u32 %s0, 4
      %s26 = int_to_ptr.hbm [resolvable:$true] %s25
      %s27 = sshll.u32 [#allocation2], 4
      %s28 = int_to_ptr.vmem [resolvable:$true] %s27
      %30 = dma.hbm_to_vmem [thread:$0]  %s26, 64, %s28, [#allocation3]
    $region5: #{tpu_custom_call.1} parent=1 // pred_fallthru
      _
    // Predicated region
    $region6: #{tpu_custom_call.1} parent=1 // pred_check
      _
    $region7: #{tpu_custom_call.1} parent=1 // pred_check_branch
      %32 = sbr.rel (0) target = $region9
    $region8: #{tpu_custom_call.1} parent=1 // pred_region
      %34 = vsyncadd [#allocation6], 0
      %s36 = sshll.u32 %s1, 4
      %s37 = int_to_ptr.hbm [resolvable:$true] %s36
      %s38 = sshll.u32 [#allocation5], 4
      %s39 = int_to_ptr.vmem [resolvable:$true] %s38
      %41 = dma.hbm_to_vmem [thread:$0]  %s37, 128, %s39, [#allocation6]
    $region9: #{tpu_custom_call.1} parent=1 // pred_fallthru
      _
    // Predicated region
    $region10: #{tpu_custom_call.1} parent=1 // pred_check
      _
    $region11: #{tpu_custom_call.1} parent=1 // pred_check_branch
      %43 = sbr.rel (0) target = $region13
    $region12: #{tpu_custom_call.1} parent=1 // pred_region
      %45 = vsyncadd [#allocation6], 0
      %s46 = sshll.u32 %s2, 4
      %s47 = int_to_ptr.hbm [resolvable:$true] %s46
      %s48 = sshll.u32 [#allocation7], 4
      %s49 = int_to_ptr.vmem [resolvable:$true] %s48
      %54 = dma.hbm_to_vmem [thread:$0]  %s47, 128, %s49, [#allocation6], 64, 64, 4
    $region13: #{tpu_custom_call.1} parent=1 // pred_fallthru
      _
    // Predicated region
    $region14: #{tpu_custom_call.1} parent=1 // pred_check
      _
    $region15: #{tpu_custom_call.1} parent=1 // pred_check_branch
      %56 = sbr.rel (0) target = $region17
    $region16: #{tpu_custom_call.1} parent=1 // pred_region
      %58 = vsyncadd [#allocation9], 0
      %s59 = sshll.u32 %s3, 4
      %s60 = int_to_ptr.hbm [resolvable:$true] %s59
      %s61 = sshll.u32 [#allocation8], 4
      %s62 = int_to_ptr.vmem [resolvable:$true] %s61
      %67 = dma.hbm_to_vmem [thread:$0]  %s60, 2048, %s62, [#allocation9], 128, 128, 8
    $region17: #{tpu_custom_call.1} parent=1 // pred_fallthru
      _
    // Predicated region
    $region18: #{tpu_custom_call.1} parent=1 // pred_check
      _
    $region19: #{tpu_custom_call.1} parent=1 // pred_check_branch
      %69 = sbr.rel (0) target = $region21
    $region20: #{tpu_custom_call.1} parent=1 // pred_region
      _
    $region21: #{tpu_custom_call.1} parent=1 // pred_fallthru
      _
    // Predicated region
    $region22: #{tpu_custom_call.1} parent=1 // pred_check
      _
    $region23: #{tpu_custom_call.1} parent=1 // pred_check_branch
      %71 = sbr.rel (0) target = $region25
    $region24: #{tpu_custom_call.1} parent=1 // pred_region
      _
    $region25: #{tpu_custom_call.1} parent=1 // pred_fallthru
      _
    // Predicated region
    $region26: #{tpu_custom_call.1} parent=1 // pred_check
      _
    $region27: #{tpu_custom_call.1} parent=1 // pred_check_branch
      %73 = sbr.rel (0) target = $region29
    $region28: #{tpu_custom_call.1} parent=1 // pred_region
      %75 = vsyncadd [#allocation9], 0
      %s76 = sshll.u32 %s6, 4
      %s77 = int_to_ptr.hbm [resolvable:$true] %s76
      %s78 = sshll.u32 [#allocation10], 4
      %s79 = int_to_ptr.vmem [resolvable:$true] %s78
      %84 = dma.hbm_to_vmem [thread:$0]  %s77, 1024, %s79, [#allocation9], 64, 64, 4
    $region29: #{tpu_custom_call.1} parent=1 // pred_fallthru
      _
    // Predicated region
    $region30: #{tpu_custom_call.1} parent=1 // pred_check
      _
    $region31: #{tpu_custom_call.1} parent=1 // pred_check_branch
      %86 = sbr.rel (0) target = $region33
    $region32: #{tpu_custom_call.1} parent=1 // pred_region
      _
    $region33: #{tpu_custom_call.1} parent=1 // pred_fallthru
      _
    // Predicated region
    $region34: #{tpu_custom_call.1} parent=1 // pred_check
      _
    $region35: #{tpu_custom_call.1} parent=1 // pred_check_branch
      %88 = sbr.rel (0) target = $region37
    $region36: #{tpu_custom_call.1} parent=1 // pred_region
      %90 = dma.done [#allocation3], 64
    $region37: #{tpu_custom_call.1} parent=1 // pred_fallthru
      _
    // Predicated region
    $region38: #{tpu_custom_call.1} parent=1 // pred_check
      _
    $region39: #{tpu_custom_call.1} parent=1 // pred_check_branch
      %92 = sbr.rel (0) target = $region41
    $region40: #{tpu_custom_call.1} parent=1 // pred_region
      %94 = dma.done [#allocation6], 128
    $region41: #{tpu_custom_call.1} parent=1 // pred_fallthru
      _
    // Predicated region
    $region42: #{tpu_custom_call.1} parent=1 // pred_check
      _
    $region43: #{tpu_custom_call.1} parent=1 // pred_check_branch
      %96 = sbr.rel (0) target = $region45
    $region44: #{tpu_custom_call.1} parent=1 // pred_region
      %98 = dma.done [#allocation6], 128
    $region45: #{tpu_custom_call.1} parent=1 // pred_fallthru
      _
    // Predicated region
    $region46: #{tpu_custom_call.1} parent=1 // pred_check
      _
    $region47: #{tpu_custom_call.1} parent=1 // pred_check_branch
      %100 = sbr.rel (0) target = $region49
    $region48: #{tpu_custom_call.1} parent=1 // pred_region
      %102 = dma.done [#allocation9], 2048
    $region49: #{tpu_custom_call.1} parent=1 // pred_fallthru
      _
    // Predicated region
    $region50: #{tpu_custom_call.1} parent=1 // pred_check
      _
    $region51: #{tpu_custom_call.1} parent=1 // pred_check_branch
      %104 = sbr.rel (0) target = $region53
    $region52: #{tpu_custom_call.1} parent=1 // pred_region
      %106 = dma.done [#allocation9], 1024
    $region53: #{tpu_custom_call.1} parent=1 // pred_fallthru
      _
    %v108 = vld [vmem:[#allocation5] sm:$0xff]
    %v109 = vld [vmem:[#allocation2] sm:$0xf]
    %v110 = vld [vmem:[#allocation7] sm:$0xf]
    %v111 = vld [vmem:[#allocation7 + $0x4] sm:$0xf]
    %v112 = vld [vmem:[#allocation8] sm:$0xff]
    %v113 = vld [vmem:[#allocation8 + $0x8] sm:$0xff]
    %v114 = vld [vmem:[#allocation8 + $0x10] sm:$0xff]
    %v115 = vld [vmem:[#allocation8 + $0x18] sm:$0xff]
    %v116 = vld [vmem:[#allocation8 + $0x20] sm:$0xff]
    %v117 = vld [vmem:[#allocation8 + $0x28] sm:$0xff]
    %v118 = vld [vmem:[#allocation8 + $0x30] sm:$0xff]
    %v119 = vld [vmem:[#allocation8 + $0x38] sm:$0xff]
    %v120 = vld [vmem:[#allocation8 + $0x40] sm:$0xff]
    %v121 = vld [vmem:[#allocation8 + $0x48] sm:$0xff]
    %v122 = vld [vmem:[#allocation8 + $0x50] sm:$0xff]
    %v123 = vld [vmem:[#allocation8 + $0x58] sm:$0xff]
    %v124 = vld [vmem:[#allocation8 + $0x60] sm:$0xff]
    %v125 = vld [vmem:[#allocation8 + $0x68] sm:$0xff]
    %v126 = vld [vmem:[#allocation8 + $0x70] sm:$0xff]
    %v127 = vld [vmem:[#allocation8 + $0x78] sm:$0xff]
    %128 = vmatpush.msra.mxu0 %v127
    %129 = vmatpush.msra.mxu0 %v126
    %130 = vmatpush.msra.mxu0 %v125
    %131 = vmatpush.msra.mxu0 %v124
    %132 = vmatpush.msra.mxu0 %v123
    %133 = vmatpush.msra.mxu0 %v122
    %134 = vmatpush.msra.mxu0 %v121
    %135 = vmatpush.msra.mxu0 %v120
    %136 = vmatpush.msra.mxu0 %v119
    %137 = vmatpush.msra.mxu0 %v118
    %138 = vmatpush.msra.mxu0 %v117
    %139 = vmatpush.msra.mxu0 %v116
    %140 = vmatpush.msra.mxu0 %v115
    %141 = vmatpush.msra.mxu0 %v114
    %142 = vmatpush.msra.mxu0 %v113
    %143 = vmatpush.msra.mxu0 %v112
    %144 = vmatmul.f32.gmra.mxu0 %v108
    %v145 = vpop.f32.mrf.mxu0
    %v146 = vadd.f32 0.0, %v145
    %147 = vdwg.mxu0
    %v150 = vunpack.c.l.b16 %v110
    %v151 = vunpack.c.l.b16 %v111
    %v152 = vpack.c.b16 %v151, %v150
    %vm154 = vcmask 130048
    %v156 = vsel %vm154, %v109, 0
    %158 = vmatpush.bf16.msra.mxu0 0
    %159 = vmatpush.bf16.msra.mxu0 0
    %160 = vmatpush.bf16.msra.mxu0 0
    %161 = vmatpush.bf16.msra.mxu0 0
    %162 = vmatpush.bf16.msra.mxu0 0
    %163 = vmatpush.bf16.msra.mxu0 0
    %164 = vmatpush.bf16.msra.mxu0 0
    %165 = vmatpush.bf16.msra.mxu0 %v152
    %166 = vmatmul.bf16.gmra.mxu0 %v156
    %v167 = vpop.f32.mrf.mxu0
    %v168 = vadd.f32 %v146, %v167
    %v169 = vpop.f32.mrf.mxu0
    %170 = vdwg.mxu0
    %v171 = vld [vmem:[%s4] sm:$0x1]
    %v173 = vperm.slane %v171, 0
    %v175 = vadd.f32 %v168, %v173
    %v176 = vtanh.pop %v175
    %v177 = vld [vmem:[%s5] sm:$0x3]
    %v178 = vperm.slane %v177, 0
    %v179 = vmul.f32 %v178, %v108
    %v180 = vperm.slane %v177, 1
    %v181 = vmul.f32 %v180, %v176
    %v182 = vadd.f32 %v179, %v181
    %v183 = vpack.c.bf16 %v182, %v182
    %v184 = vld [vmem:[#allocation10] sm:$0xf]
    %v185 = vld [vmem:[#allocation10 + $0x4] sm:$0xf]
    %v186 = vld [vmem:[#allocation10 + $0x8] sm:$0xf]
    %v187 = vld [vmem:[#allocation10 + $0xc] sm:$0xf]
    %v188 = vld [vmem:[#allocation10 + $0x10] sm:$0xf]
    %v189 = vld [vmem:[#allocation10 + $0x14] sm:$0xf]
    %v190 = vld [vmem:[#allocation10 + $0x18] sm:$0xf]
    %v191 = vld [vmem:[#allocation10 + $0x1c] sm:$0xf]
    %v192 = vld [vmem:[#allocation10 + $0x20] sm:$0xf]
    %v193 = vld [vmem:[#allocation10 + $0x24] sm:$0xf]
    %v194 = vld [vmem:[#allocation10 + $0x28] sm:$0xf]
    %v195 = vld [vmem:[#allocation10 + $0x2c] sm:$0xf]
    %v196 = vld [vmem:[#allocation10 + $0x30] sm:$0xf]
    %v197 = vld [vmem:[#allocation10 + $0x34] sm:$0xf]
    %v198 = vld [vmem:[#allocation10 + $0x38] sm:$0xf]
    %v199 = vld [vmem:[#allocation10 + $0x3c] sm:$0xf]
    %v200 = vld [vmem:[%s7] sm:$0x1]
    %v202 = vperm.slane %v200, 0
    %v220 = vunpack.c.l.b16 %v184
    %v221 = vunpack.c.l.b16 %v185
    %v222 = vunpack.c.l.b16 %v186
    %v223 = vunpack.c.l.b16 %v187
    %v224 = vunpack.c.l.b16 %v188
    %v225 = vunpack.c.l.b16 %v189
    %v226 = vunpack.c.l.b16 %v190
    %v227 = vunpack.c.l.b16 %v191
    %v228 = vunpack.c.l.b16 %v192
    %v229 = vunpack.c.l.b16 %v193
    %v230 = vunpack.c.l.b16 %v194
    %v231 = vunpack.c.l.b16 %v195
    %v232 = vunpack.c.l.b16 %v196
    %v233 = vunpack.c.l.b16 %v197
    %v234 = vunpack.c.l.b16 %v198
    %v235 = vunpack.c.l.b16 %v199
    %v236 = vpack.c.b16 %v221, %v220
    %v237 = vpack.c.b16 %v223, %v222
    %v238 = vpack.c.b16 %v225, %v224
    %v239 = vpack.c.b16 %v227, %v226
    %v240 = vpack.c.b16 %v229, %v228
    %v241 = vpack.c.b16 %v231, %v230
    %v242 = vpack.c.b16 %v233, %v232
    %v243 = vpack.c.b16 %v235, %v234
    %252 = vmatpush.bf16.msra.mxu0 %v243
    %253 = vmatpush.bf16.msra.mxu0 %v242
    %254 = vmatpush.bf16.msra.mxu0 %v241
    %255 = vmatpush.bf16.msra.mxu0 %v240
    %256 = vmatpush.bf16.msra.mxu0 %v239
    %257 = vmatpush.bf16.msra.mxu0 %v238
    %258 = vmatpush.bf16.msra.mxu0 %v237
    %259 = vmatpush.bf16.msra.mxu0 %v236
    %260 = vmatmul.bf16.gmra.mxu0 %v183
    %v261 = vpop.f32.mrf.mxu0
    %v262 = vadd.f32 %v202, %v261
    %v263 = vpop.f32.mrf.mxu0
    %264 = vdwg.mxu0
    %265 = vst [vmem:[#allocation11] sm:$0xff] %v262
    %266 = vst [vmem:[#allocation12] sm:$0xff] %v182
    // Predicated region
    $region54: #{tpu_custom_call.1} parent=1 // pred_check
      _
    $region55: #{tpu_custom_call.1} parent=1 // pred_check_branch
      %268 = sbr.rel (0) target = $region57
    $region56: #{tpu_custom_call.1} parent=1 // pred_region
      %270 = vsyncadd [#allocation4], 0
      %s272 = sshll.u32 [#allocation11], 4
      %s273 = int_to_ptr.vmem [resolvable:$true] %s272
      %s274 = sshll.u32 %s8, 4
      %s275 = int_to_ptr.hbm [resolvable:$true] %s274
      %277 = dma.vmem_to_hbm [thread:$0]  %s273, 128, %s275, [#allocation4]
    $region57: #{tpu_custom_call.1} parent=1 // pred_fallthru
      _
    // Predicated region
    $region58: #{tpu_custom_call.1} parent=1 // pred_check
      _
    $region59: #{tpu_custom_call.1} parent=1 // pred_check_branch
      %279 = sbr.rel (0) target = $region61
    $region60: #{tpu_custom_call.1} parent=1 // pred_region
      %281 = vsyncadd [#allocation13], 0
      %s283 = sshll.u32 [#allocation12], 4
      %s284 = int_to_ptr.vmem [resolvable:$true] %s283
      %s285 = sshll.u32 %s9, 4
      %s286 = int_to_ptr.hbm [resolvable:$true] %s285
      %288 = dma.vmem_to_hbm [thread:$0]  %s284, 128, %s286, [#allocation13]
    $region61: #{tpu_custom_call.1} parent=1 // pred_fallthru
      _
    // Predicated region
    $region62: #{tpu_custom_call.1} parent=1 // pred_check
      _
    $region63: #{tpu_custom_call.1} parent=1 // pred_check_branch
      %290 = sbr.rel (0) target = $region65
    $region64: #{tpu_custom_call.1} parent=1 // pred_region
      %292 = dma.done [#allocation4], 128
    $region65: #{tpu_custom_call.1} parent=1 // pred_fallthru
      _
    // Predicated region
    $region66: #{tpu_custom_call.1} parent=1 // pred_check
      _
    $region67: #{tpu_custom_call.1} parent=1 // pred_check_branch
      %294 = sbr.rel (0) target = $region69
    $region68: #{tpu_custom_call.1} parent=1 // pred_region
      %296 = dma.done [#allocation13], 128
    $region69: #{tpu_custom_call.1} parent=1 // pred_fallthru
      _
    %297 = vsyncpa [#allocation3], 1
    %298 = vsyncpa [#allocation6], 1
    %299 = vsyncpa [#allocation9], 1
    %300 = vsyncpa [#allocation4], 1
    %301 = vsyncpa [#allocation13], 1

</llo_original>
